<compile_context>
chip_gen: v7x
topology: tpu7x:2x2x1
jax: 0.10.0
libtpu: 0.0.40
codegen_flags: <defaults>
</compile_context>

<pallas_src>
import functools
import math

import jax
import jax.numpy as jnp
from jax import lax
from jax.experimental import pallas as pl
from jax.experimental.pallas import tpu as pltpu


# ---------------------------------------------------------------------------
# Parameter preparation (done ONCE, outside the per-step hot path).
# ---------------------------------------------------------------------------
def prepare_weights(w_ih, w_hh, dtype=None):
    """Transpose PyTorch-layout weights once.

    w_ih: (4H, I), w_hh: (4H, H)  ->  w_ih_t: (I, 4H), w_hh_t: (H, 4H)
    so that x @ w_ih_t == x @ w_ih.T and h @ w_hh_t == h @ w_hh.T.
    """
    w_ih_t = jnp.transpose(w_ih)
    w_hh_t = jnp.transpose(w_hh)
    if dtype is not None:
        w_ih_t = w_ih_t.astype(dtype)
        w_hh_t = w_hh_t.astype(dtype)
    return w_ih_t, w_hh_t


# ---------------------------------------------------------------------------
# Single-step kernel (== RNNCell.forward).  Correctness / API path only.
# ---------------------------------------------------------------------------
def lstm_cell_kernel(x_ref, h_ref, c_ref, wih_ref, whh_ref, h_out_ref, c_out_ref):
    H = h_out_ref.shape[1]
    # Two MXU pushes accumulating into the same f32 result; no concat copy.
    gates = jnp.dot(x_ref[...].astype(wih_ref.dtype), wih_ref[...],
                    preferred_element_type=jnp.float32)
    gates = gates + jnp.dot(h_ref[...].astype(whh_ref.dtype), whh_ref[...],
                            preferred_element_type=jnp.float32)

    i_g = jax.nn.sigmoid(gates[:, 0 * H:1 * H])
    f_g = jax.nn.sigmoid(gates[:, 1 * H:2 * H])
    g_g = jnp.tanh(gates[:, 2 * H:3 * H])
    o_g = jax.nn.sigmoid(gates[:, 3 * H:4 * H])

    c_new = f_g * c_ref[...].astype(jnp.float32) + i_g * g_g
    h_new = o_g * jnp.tanh(c_new)

    c_out_ref[...] = c_new.astype(c_out_ref.dtype)
    h_out_ref[...] = h_new.astype(h_out_ref.dtype)


def rnn_cell_forward(x, h, c, w_ih_t, w_hh_t):
    """Single LSTM-cell step (exact module forward).

    NOTE: do NOT step this from an outer XLA/Python loop for real sequences --
    the per-call launch and HBM round trip of x/h/c/weights dwarf the work.
    Use rnn_cell_sequence_forward for sequences.
    """
    B, I = x.shape
    H = h.shape[1]
    G = w_ih_t.shape[1]
    assert G == 4 * H and w_ih_t.shape == (I, G) and w_hh_t.shape == (H, G)
    assert H % 128 == 0, "keep H a multiple of 128 so gate slices stay lane-aligned"

    full = lambda shape: pl.BlockSpec(shape, lambda: tuple(0 for _ in shape))

    h_new, c_new = pl.pallas_call(
        lstm_cell_kernel,
        out_shape=(
            jax.ShapeDtypeStruct((B, H), x.dtype),
            jax.ShapeDtypeStruct((B, H), x.dtype),
        ),
        in_specs=[full((B, I)), full((B, H)), full((B, H)),
                  full((I, G)), full((H, G))],
        out_specs=(full((B, H)), full((B, H))),
        # Recurrent state updated in place: h -> h_out, c -> c_out.
        input_output_aliases={1: 0, 2: 1},
    )(x, h, c, w_ih_t, w_hh_t)
    return h_new, c_new


# ---------------------------------------------------------------------------
# Sequence kernel: time-blocked, batch-parallel recurrence with the input
# projection hoisted out and w_hh^T resident in VMEM.
# ---------------------------------------------------------------------------
def lstm_seq_kernel(gx_ref, h0_ref, c0_ref, whh_ref, hs_ref, c_out_ref, h_sc, c_sc):
    H = h_sc.shape[1]
    Tb = gx_ref.shape[0]

    # First time-block of this batch block: load the initial state.
    @pl.when(pl.program_id(1) == 0)
    def _():
        h_sc[...] = h0_ref[...].astype(jnp.float32)
        c_sc[...] = c0_ref[...].astype(jnp.float32)

    w_hh = whh_ref[...]          # (H, 4H); VMEM-resident, loaded once per block

    def step(t, carry):
        h, c = carry             # f32 (Bb, H) loop-carried -- no per-step scratch stores
        # Serial per-step work is only the K = H recurrent matmul; the x
        # projection was hoisted into one big parallel matmul outside.
        gates = gx_ref[t].astype(jnp.float32) + jnp.dot(
            h.astype(w_hh.dtype), w_hh, preferred_element_type=jnp.float32)
        i_g = jax.nn.sigmoid(gates[:, 0 * H:1 * H])
        f_g = jax.nn.sigmoid(gates[:, 1 * H:2 * H])
        g_g = jnp.tanh(gates[:, 2 * H:3 * H])
        o_g = jax.nn.sigmoid(gates[:, 3 * H:4 * H])
        c_new = f_g * c + i_g * g_g
        h_new = o_g * jnp.tanh(c_new)
        hs_ref[t] = h_new.astype(hs_ref.dtype)     # single (Bb, H) store per step
        return h_new, c_new

    h_fin, c_fin = lax.fori_loop(0, Tb, step, (h_sc[...], c_sc[...]), unroll=True)

    # Persist the carry across time blocks.
    h_sc[...] = h_fin
    c_sc[...] = c_fin
    # c_out's block index is constant along the (inner) time axis: write it
    # every time block; the value present when the batch-block index changes
    # (i.e. after the last time block) is what gets flushed to HBM.
    c_out_ref[...] = c_fin.astype(c_out_ref.dtype)


def _largest_divisor_leq(n, cap):
    cap = max(1, min(cap, n))
    for d in range(cap, 0, -1):
        if n % d == 0:
            return d
    return 1


def rnn_cell_sequence_forward(xs, h0, c0, w_ih_t, w_hh_t, *,
                              time_block=32, batch_block=None,
                              matmul_dtype=None, vmem_limit_bytes=None):
    """Apply the RNNCell (LSTM) over a sequence.  xs: (T, B, I) -> (hs, c_T)."""
    T, B, I = xs.shape
    H = h0.shape[1]
    G = w_ih_t.shape[1]
    assert G == 4 * H and w_ih_t.shape == (I, G) and w_hh_t.shape == (H, G)
    assert H % 128 == 0, "keep H a multiple of 128 so gate slices stay lane-aligned"

    md = xs.dtype if matmul_dtype is None else matmul_dtype

    # --- Hoisted input projection: one big, parallel, MXU-filling matmul. ---
    # (Plain XLA: M = T*B rows, no recurrence; only K = H work stays serial.)
    gates_x = jnp.dot(xs.reshape(T * B, I).astype(md), w_ih_t.astype(md),
                      preferred_element_type=jnp.float32)
    gates_x = gates_x.reshape(T, B, G).astype(md)    # stream dtype (bf16 halves DMA)

    w_hh = w_hh_t.astype(md)

    Tb = _largest_divisor_leq(T, time_block)
    Bb = B if batch_block is None else batch_block
    assert B % Bb == 0 and (Bb % 8 == 0 or Bb == B), \
        "batch block must tile B and keep the sublane dim a multiple of 8"

    cp = dict(dimension_semantics=("parallel", "arbitrary"))
    if vmem_limit_bytes is not None:
        cp["vmem_limit_bytes"] = vmem_limit_bytes

    hs, c_final = pl.pallas_call(
        lstm_seq_kernel,
        out_shape=(
            jax.ShapeDtypeStruct((T, B, H), xs.dtype),
            jax.ShapeDtypeStruct((B, H), xs.dtype),
        ),
        grid=(B // Bb, T // Tb),
        in_specs=[
            pl.BlockSpec((Tb, Bb, G), lambda b, t: (t, b, 0)),   # gates_x slab
            pl.BlockSpec((Bb, H), lambda b, t: (b, 0)),          # h0 (read at t==0)
            pl.BlockSpec((Bb, H), lambda b, t: (b, 0)),          # c0 (read at t==0)
            # Weight VMEM-resident (constant index map -> DMA'd once per batch
            # block, not per timestep).  For very large H on v7x (64 MiB VMEM):
            # add pipeline_mode=pl.Buffered(1) and/or tile the 4H axis.
            pl.BlockSpec((H, G), lambda b, t: (0, 0)),
        ],
        out_specs=(
            pl.BlockSpec((Tb, Bb, H), lambda b, t: (t, b, 0)),   # h_t slab
            pl.BlockSpec((Bb, H), lambda b, t: (b, 0)),          # final c per block
        ),
        scratch_shapes=[
            pltpu.VMEM((Bb, H), jnp.float32),                    # h carry
            pltpu.VMEM((Bb, H), jnp.float32),                    # c carry
        ],
        compiler_params=pltpu.CompilerParams(**cp),
    )(gates_x, h0, c0, w_hh)
    return hs, c_final


# ---------------------------------------------------------------------------
# Pure-JAX references mirroring the PyTorch semantics.
# ---------------------------------------------------------------------------
def rnn_cell_forward_ref(x, h, c, w_ih, w_hh):
    gates = x @ w_ih.T + h @ w_hh.T
    i_g, f_g, g_g, o_g = jnp.split(gates, 4, axis=1)
    c_new = jax.nn.sigmoid(f_g) * c + jax.nn.sigmoid(i_g) * jnp.tanh(g_g)
    h_new = jax.nn.sigmoid(o_g) * jnp.tanh(c_new)
    return h_new, c_new


def rnn_sequence_ref(xs, h, c, w_ih, w_hh):
    hs = []
    for t in range(xs.shape[0]):
        h, c = rnn_cell_forward_ref(xs[t], h, c, w_ih, w_hh)
        hs.append(h)
    return jnp.stack(hs, axis=0), h, c


if __name__ == "__main__":
    # Module config (LSTM): gate_multiplier=4, n_hidden_states=2, bias=False,
    # output_size=None -> output_size == hidden_size (no w_ho projection).
    B = 16
    T = 8
    input_size = 128
    hidden_size = 128
    gate_size = 4 * hidden_size
    dtype = jnp.float32

    # reset_parameters(): uniform(-stdev, stdev), stdev = 1/sqrt(hidden_size).
    stdev = 1.0 / math.sqrt(hidden_size)
    key = jax.random.PRNGKey(0)
    k_x, k_wih, k_whh = jax.random.split(key, 3)
    w_ih = jax.random.uniform(k_wih, (gate_size, input_size), dtype,
                              minval=-stdev, maxval=stdev)
    w_hh = jax.random.uniform(k_whh, (gate_size, hidden_size), dtype,
                              minval=-stdev, maxval=stdev)

    # Transposed once, outside the hot path.
    w_ih_t, w_hh_t = prepare_weights(w_ih, w_hh)
    w_ih_t, w_hh_t = jax.block_until_ready((w_ih_t, w_hh_t))

    xs = jax.random.normal(k_x, (T, B, input_size), dtype)

    # init_hidden(bsz): zero-initialized hidden states on first call.
    h0 = jnp.zeros((B, hidden_size), dtype)
    c0 = jnp.zeros((B, hidden_size), dtype)

    # --- Single step (exact module forward; correctness/API path only) ---
    h1, c1 = jax.jit(rnn_cell_forward)(xs[0], h0, c0, w_ih_t, w_hh_t)
    jax.block_until_ready((h1, c1))
    h1_ref, c1_ref = rnn_cell_forward_ref(xs[0], h0, c0, w_ih, w_hh)
    assert h1.shape == (B, hidden_size) and c1.shape == (B, hidden_size)
    assert jnp.allclose(h1, h1_ref, atol=1e-3, rtol=1e-3)
    assert jnp.allclose(c1, c1_ref, atol=1e-3, rtol=1e-3)

    hs_ref, hT_ref, cT_ref = rnn_sequence_ref(xs, h0, c0, w_ih, w_hh)

    # --- Sequence: hoisted x-projection + time-blocked, batch-parallel grid ---
    seq_fn = jax.jit(functools.partial(
        rnn_cell_sequence_forward, time_block=4, batch_block=8))
    hs, cT = seq_fn(xs, h0, c0, w_ih_t, w_hh_t)
    jax.block_until_ready((hs, cT))
    assert hs.shape == (T, B, hidden_size) and cT.shape == (B, hidden_size)
    assert jnp.allclose(hs, hs_ref, atol=1e-3, rtol=1e-3)
    assert jnp.allclose(hs[-1], hT_ref, atol=1e-3, rtol=1e-3)
    assert jnp.allclose(cT, cT_ref, atol=1e-3, rtol=1e-3)

    # --- bf16 matmul-operand path (f32 carries / gate math / outputs) ---
    seq_fn_bf16 = jax.jit(functools.partial(
        rnn_cell_sequence_forward, time_block=4, batch_block=8,
        matmul_dtype=jnp.bfloat16))
    hs_b, cT_b = seq_fn_bf16(xs, h0, c0, w_ih_t, w_hh_t)
    jax.block_until_ready((hs_b, cT_b))
    assert jnp.allclose(hs_b, hs_ref, atol=5e-2, rtol=5e-2)
    assert jnp.allclose(cT_b, cT_ref, atol=5e-2, rtol=5e-2)

    # TODO(synk): the output_size != hidden_size branch (extra F.linear with
    # w_ho on h') is not exercised; it would be one more small MXU matmul on h'.
    print("KERNEL_OK")
</pallas_src>

<mosaic_0001>
module attributes {stable_mosaic.version = 11 : i64} {
  func.func @lstm_cell_kernel(%arg0: memref<16x128xf32, #tpu.memory_space<vmem>>, %arg1: memref<16x128xf32, #tpu.memory_space<vmem>>, %arg2: memref<16x128xf32, #tpu.memory_space<vmem>>, %arg3: memref<128x512xf32, #tpu.memory_space<vmem>>, %arg4: memref<128x512xf32, #tpu.memory_space<vmem>>, %arg5: memref<16x128xf32, #tpu.memory_space<vmem>>, %arg6: memref<16x128xf32, #tpu.memory_space<vmem>>) attributes {dimension_semantics = [], scalar_prefetch = 0 : i64, scratch_operands = 0 : i64, tpu.core_type = #tpu.core_type<tc>} {
    %c0 = arith.constant 0 : index
    %c0_0 = arith.constant 0 : index
    %0 = vector.load %arg0[%c0, %c0_0] : memref<16x128xf32, #tpu.memory_space<vmem>>, vector<16x128xf32>
    %c0_1 = arith.constant 0 : index
    %c0_2 = arith.constant 0 : index
    %1 = vector.load %arg3[%c0_1, %c0_2] : memref<128x512xf32, #tpu.memory_space<vmem>>, vector<128x512xf32>
    %cst = arith.constant dense<0.000000e+00> : vector<16x512xf32>
    %2 = tpu.matmul %0, %1, %cst {dimension_numbers = #tpu.dot_dimension_numbers<[1], [0], [0], [1], [0, 0, 1, 1], [], []>} : vector<16x128xf32>, vector<128x512xf32>, vector<16x512xf32> -> vector<16x512xf32>
    %c0_3 = arith.constant 0 : index
    %c0_4 = arith.constant 0 : index
    %3 = vector.load %arg1[%c0_3, %c0_4] : memref<16x128xf32, #tpu.memory_space<vmem>>, vector<16x128xf32>
    %c0_5 = arith.constant 0 : index
    %c0_6 = arith.constant 0 : index
    %4 = vector.load %arg4[%c0_5, %c0_6] : memref<128x512xf32, #tpu.memory_space<vmem>>, vector<128x512xf32>
    %cst_7 = arith.constant dense<0.000000e+00> : vector<16x512xf32>
    %5 = tpu.matmul %3, %4, %cst_7 {dimension_numbers = #tpu.dot_dimension_numbers<[1], [0], [0], [1], [0, 0, 1, 1], [], []>} : vector<16x128xf32>, vector<128x512xf32>, vector<16x512xf32> -> vector<16x512xf32>
    %6 = arith.addf %2, %5 : vector<16x512xf32>
    %7 = vector.extract_strided_slice %6 {offsets = [0, 0], sizes = [16, 128], strides = [1, 1]} : vector<16x512xf32> to vector<16x128xf32>
    %8 = arith.negf %7 : vector<16x128xf32>
    %9 = math.exp %8 : vector<16x128xf32>
    %cst_8 = arith.constant 1.000000e+00 : f32
    %10 = vector.broadcast %cst_8 : f32 to vector<16x128xf32>
    %11 = arith.addf %10, %9 : vector<16x128xf32>
    %12 = arith.divf %10, %11 : vector<16x128xf32>
    %13 = vector.extract_strided_slice %6 {offsets = [0, 128], sizes = [16, 128], strides = [1, 1]} : vector<16x512xf32> to vector<16x128xf32>
    %14 = arith.negf %13 : vector<16x128xf32>
    %15 = math.exp %14 : vector<16x128xf32>
    %cst_9 = arith.constant 1.000000e+00 : f32
    %16 = vector.broadcast %cst_9 : f32 to vector<16x128xf32>
    %17 = arith.addf %16, %15 : vector<16x128xf32>
    %18 = arith.divf %16, %17 : vector<16x128xf32>
    %19 = vector.extract_strided_slice %6 {offsets = [0, 256], sizes = [16, 128], strides = [1, 1]} : vector<16x512xf32> to vector<16x128xf32>
    %20 = math.tanh %19 : vector<16x128xf32>
    %21 = vector.extract_strided_slice %6 {offsets = [0, 384], sizes = [16, 128], strides = [1, 1]} : vector<16x512xf32> to vector<16x128xf32>
    %22 = arith.negf %21 : vector<16x128xf32>
    %23 = math.exp %22 : vector<16x128xf32>
    %cst_10 = arith.constant 1.000000e+00 : f32
    %24 = vector.broadcast %cst_10 : f32 to vector<16x128xf32>
    %25 = arith.addf %24, %23 : vector<16x128xf32>
    %26 = arith.divf %24, %25 : vector<16x128xf32>
    %c0_11 = arith.constant 0 : index
    %c0_12 = arith.constant 0 : index
    %27 = vector.load %arg2[%c0_11, %c0_12] : memref<16x128xf32, #tpu.memory_space<vmem>>, vector<16x128xf32>
    %28 = arith.mulf %18, %27 : vector<16x128xf32>
    %29 = arith.mulf %12, %20 : vector<16x128xf32>
    %30 = arith.addf %28, %29 : vector<16x128xf32>
    %31 = math.tanh %30 : vector<16x128xf32>
    %32 = arith.mulf %26, %31 : vector<16x128xf32>
    %c0_13 = arith.constant 0 : index
    %c0_14 = arith.constant 0 : index
    %33 = vector.load %arg6[%c0_13, %c0_14] : memref<16x128xf32, #tpu.memory_space<vmem>>, vector<16x128xf32>
    tpu.vector_store %arg6[%c0_13, %c0_14], %30 {strides = array<i32>} : memref<16x128xf32, #tpu.memory_space<vmem>>, vector<16x128xf32>,
    %c0_15 = arith.constant 0 : index
    %c0_16 = arith.constant 0 : index
    %34 = vector.load %arg5[%c0_15, %c0_16] : memref<16x128xf32, #tpu.memory_space<vmem>>, vector<16x128xf32>
    tpu.vector_store %arg5[%c0_15, %c0_16], %32 {strides = array<i32>} : memref<16x128xf32, #tpu.memory_space<vmem>>, vector<16x128xf32>,
    return
  }
}

</mosaic_0001>

<llo_original>
// kernel: rnn_cell_forward.1
$region0: #{rnn_cell_forward.1}
  #allocation0 [shape = 'u32[]', space=smem, size = 0x4, offset = 0x4, fixed_abs, tag = 'smem constant byte address 0x4 - core index']
  #allocation1 [shape = 'u32[144,128]{1,0:T(1,128)}', space=vmem, size = 0x12000, scoped, tag = 'internal scratch']
  %s0 = inlined_call_operand.vmem [shape: f32[16,128], index: 0, kind: input, shape index: {}]
  %s1 = inlined_call_operand.hbm [shape: f32[16,128], index: 1, kind: input, shape index: {}, may-alias: {1,5}]
  %s2 = inlined_call_operand.hbm [shape: f32[16,128], index: 2, kind: input, shape index: {}, may-alias: {2,6}]
  %s3 = inlined_call_operand.hbm [shape: f32[128,512], index: 3, kind: input, shape index: {}]
  %s4 = inlined_call_operand.hbm [shape: f32[128,512], index: 4, kind: input, shape index: {}]
  %s5 = inlined_call_operand.hbm [shape: f32[16,128], index: 5, kind: output, shape index: {0}, may-alias: {1,5}]
  %s6 = inlined_call_operand.hbm [shape: f32[16,128], index: 6, kind: output, shape index: {1}, may-alias: {2,6}]
  %7 = xla_tuple %s5, %s6
  %s8 = sld [smem:[#allocation0]]
  $region54: #{rnn_cell_forward.1} parent=0
    _
  %s10 = ssub.s32 1, %s8
  %s11 = scalar_select 0, %s10, %s8
  $region1: #{rnn_cell_forward.1} parent=0
    #allocation2 [shape = 'u8[8192]{0}', space=vmem, size = 0x2000, scoped, tag = 'input window, operand 1, single buffered']
    #allocation3 [shape = 's32[1]{0}', space=sflag, size = 0x4, scoped, tag = 'scoped memory for rnn_cell_forward.1']
    #allocation4 [shape = 's32[1]{0}', space=sflag, size = 0x4, scoped, tag = 'scoped memory for rnn_cell_forward.1']
    #allocation5 [shape = 'u8[8192]{0}', space=vmem, size = 0x2000, scoped, tag = 'input window, operand 2, single buffered']
    #allocation6 [shape = 's32[1]{0}', space=sflag, size = 0x4, scoped, tag = 'scoped memory for rnn_cell_forward.1']
    #allocation7 [shape = 'u8[262144]{0}', space=vmem, size = 0x40000, scoped, tag = 'input window, operand 3, single buffered']
    #allocation8 [shape = 'u8[262144]{0}', space=vmem, size = 0x40000, scoped, tag = 'input window, operand 4, single buffered']
    #allocation9 [shape = 's32[1]{0}', space=sflag, size = 0x4, scoped, tag = 'scoped memory for rnn_cell_forward.1']
    #allocation10 [shape = 'u8[8192]{0}', space=vmem, size = 0x2000, scoped, tag = 'output window, operand 0, single buffered']
    #allocation11 [shape = 'u8[8192]{0}', space=vmem, size = 0x2000, scoped, tag = 'output window, operand 1, single buffered']
    #allocation12 [shape = 's32[1]{0}', space=sflag, size = 0x4, scoped, tag = 'scoped memory for rnn_cell_forward.1']
    %12 = vsyncpa [#allocation3], 0
    %13 = vsyncpa [#allocation6], 0
    %14 = vsyncpa [#allocation9], 0
    %15 = vsyncpa [#allocation4], 0
    %16 = vsyncpa [#allocation12], 0
    // Predicated region
    $region2: #{rnn_cell_forward.1} parent=1 // pred_check
      _
    $region3: #{rnn_cell_forward.1} parent=1 // pred_check_branch
      %18 = sbr.rel (0) target = $region5
    $region4: #{rnn_cell_forward.1} parent=1 // pred_region
      _
    $region5: #{rnn_cell_forward.1} parent=1 // pred_fallthru
      _
    // Predicated region
    $region6: #{rnn_cell_forward.1} parent=1 // pred_check
      _
    $region7: #{rnn_cell_forward.1} parent=1 // pred_check_branch
      %20 = sbr.rel (0) target = $region9
    $region8: #{rnn_cell_forward.1} parent=1 // pred_region
      %s22 = ssub.s32 256, 256
      %23 = vsyncadd [#allocation3], %s22
      %s24 = sshll.u32 [#allocation2], 4
      %s25 = int_to_ptr.vmem [resolvable:$true] %s24
      %30 = dma.hbm_to_vmem [thread:$0]  %s1, 256, %s25, [#allocation3], 128, 128, 8
    $region9: #{rnn_cell_forward.1} parent=1 // pred_fallthru
      _
    // Predicated region
    $region10: #{rnn_cell_forward.1} parent=1 // pred_check
      _
    $region11: #{rnn_cell_forward.1} parent=1 // pred_check_branch
      %32 = sbr.rel (0) target = $region13
    $region12: #{rnn_cell_forward.1} parent=1 // pred_region
      %s34 = ssub.s32 256, 256
      %35 = vsyncadd [#allocation6], %s34
      %s36 = sshll.u32 [#allocation5], 4
      %s37 = int_to_ptr.vmem [resolvable:$true] %s36
      %42 = dma.hbm_to_vmem [thread:$0]  %s2, 256, %s37, [#allocation6], 128, 128, 8
    $region13: #{rnn_cell_forward.1} parent=1 // pred_fallthru
      _
    // Predicated region
    $region14: #{rnn_cell_forward.1} parent=1 // pred_check
      _
    $region15: #{rnn_cell_forward.1} parent=1 // pred_check_branch
      %44 = sbr.rel (0) target = $region17
    $region16: #{rnn_cell_forward.1} parent=1 // pred_region
      %s46 = ssub.s32 8192, 8192
      %47 = vsyncadd [#allocation6], %s46
      %s48 = sshll.u32 [#allocation7], 4
      %s49 = int_to_ptr.vmem [resolvable:$true] %s48
      %54 = dma.hbm_to_vmem [thread:$0]  %s3, 8192, %s49, [#allocation6], 512, 512, 32
    $region17: #{rnn_cell_forward.1} parent=1 // pred_fallthru
      _
    // Predicated region
    $region18: #{rnn_cell_forward.1} parent=1 // pred_check
      _
    $region19: #{rnn_cell_forward.1} parent=1 // pred_check_branch
      %56 = sbr.rel (0) target = $region21
    $region20: #{rnn_cell_forward.1} parent=1 // pred_region
      %s58 = ssub.s32 8192, 8192
      %59 = vsyncadd [#allocation9], %s58
      %s60 = sshll.u32 [#allocation8], 4
      %s61 = int_to_ptr.vmem [resolvable:$true] %s60
      %66 = dma.hbm_to_vmem [thread:$0]  %s4, 8192, %s61, [#allocation9], 512, 512, 32
    $region21: #{rnn_cell_forward.1} parent=1 // pred_fallthru
      _
    // Predicated region
    $region22: #{rnn_cell_forward.1} parent=1 // pred_check
      _
    $region23: #{rnn_cell_forward.1} parent=1 // pred_check_branch
      %68 = sbr.rel (0) target = $region25
    $region24: #{rnn_cell_forward.1} parent=1 // pred_region
      %69 = dma.done [#allocation3], 256
    $region25: #{rnn_cell_forward.1} parent=1 // pred_fallthru
      _
    // Predicated region
    $region26: #{rnn_cell_forward.1} parent=1 // pred_check
      _
    $region27: #{rnn_cell_forward.1} parent=1 // pred_check_branch
      %71 = sbr.rel (0) target = $region29
    $region28: #{rnn_cell_forward.1} parent=1 // pred_region
      %72 = dma.done [#allocation6], 256
    $region29: #{rnn_cell_forward.1} parent=1 // pred_fallthru
      _
    // Predicated region
    $region30: #{rnn_cell_forward.1} parent=1 // pred_check
      _
    $region31: #{rnn_cell_forward.1} parent=1 // pred_check_branch
      %74 = sbr.rel (0) target = $region33
    $region32: #{rnn_cell_forward.1} parent=1 // pred_region
      %75 = dma.done [#allocation6], 8192
    $region33: #{rnn_cell_forward.1} parent=1 // pred_fallthru
      _
    // Predicated region
    $region34: #{rnn_cell_forward.1} parent=1 // pred_check
      _
    $region35: #{rnn_cell_forward.1} parent=1 // pred_check_branch
      %77 = sbr.rel (0) target = $region37
    $region36: #{rnn_cell_forward.1} parent=1 // pred_region
      %78 = dma.done [#allocation9], 8192
    $region37: #{rnn_cell_forward.1} parent=1 // pred_fallthru
      _
    %v79 = vld [vmem:[%s0] sm:$0xff]
    %v80 = vld [vmem:[%s0 + $0x8] sm:$0xff]
    %v81 = vld [vmem:[#allocation7] sm:$0xff]
    %v82 = vld [vmem:[#allocation7 + $0x8] sm:$0xff]
    %v83 = vld [vmem:[#allocation7 + $0x10] sm:$0xff]
    %v84 = vld [vmem:[#allocation7 + $0x18] sm:$0xff]
    %v85 = vld [vmem:[#allocation7 + $0x20] sm:$0xff]
    %v86 = vld [vmem:[#allocation7 + $0x28] sm:$0xff]
    %v87 = vld [vmem:[#allocation7 + $0x30] sm:$0xff]
    %v88 = vld [vmem:[#allocation7 + $0x38] sm:$0xff]
    %v89 = vld [vmem:[#allocation7 + $0x40] sm:$0xff]
    %v90 = vld [vmem:[#allocation7 + $0x48] sm:$0xff]
    %v91 = vld [vmem:[#allocation7 + $0x50] sm:$0xff]
    %v92 = vld [vmem:[#allocation7 + $0x58] sm:$0xff]
    %v93 = vld [vmem:[#allocation7 + $0x60] sm:$0xff]
    %v94 = vld [vmem:[#allocation7 + $0x68] sm:$0xff]
    %v95 = vld [vmem:[#allocation7 + $0x70] sm:$0xff]
    %v96 = vld [vmem:[#allocation7 + $0x78] sm:$0xff]
    %v97 = vld [vmem:[#allocation7 + $0x80] sm:$0xff]
    %v98 = vld [vmem:[#allocation7 + $0x88] sm:$0xff]
    %v99 = vld [vmem:[#allocation7 + $0x90] sm:$0xff]
    %v100 = vld [vmem:[#allocation7 + $0x98] sm:$0xff]
    %v101 = vld [vmem:[#allocation7 + $0xa0] sm:$0xff]
    %v102 = vld [vmem:[#allocation7 + $0xa8] sm:$0xff]
    %v103 = vld [vmem:[#allocation7 + $0xb0] sm:$0xff]
    %v104 = vld [vmem:[#allocation7 + $0xb8] sm:$0xff]
    %v105 = vld [vmem:[#allocation7 + $0xc0] sm:$0xff]
    %v106 = vld [vmem:[#allocation7 + $0xc8] sm:$0xff]
    %v107 = vld [vmem:[#allocation7 + $0xd0] sm:$0xff]
    %v108 = vld [vmem:[#allocation7 + $0xd8] sm:$0xff]
    %v109 = vld [vmem:[#allocation7 + $0xe0] sm:$0xff]
    %v110 = vld [vmem:[#allocation7 + $0xe8] sm:$0xff]
    %v111 = vld [vmem:[#allocation7 + $0xf0] sm:$0xff]
    %v112 = vld [vmem:[#allocation7 + $0xf8] sm:$0xff]
    %v113 = vld [vmem:[#allocation7 + $0x100] sm:$0xff]
    %v114 = vld [vmem:[#allocation7 + $0x108] sm:$0xff]
    %v115 = vld [vmem:[#allocation7 + $0x110] sm:$0xff]
    %v116 = vld [vmem:[#allocation7 + $0x118] sm:$0xff]
    %v117 = vld [vmem:[#allocation7 + $0x120] sm:$0xff]
    %v118 = vld [vmem:[#allocation7 + $0x128] sm:$0xff]
    %v119 = vld [vmem:[#allocation7 + $0x130] sm:$0xff]
    %v120 = vld [vmem:[#allocation7 + $0x138] sm:$0xff]
    %v121 = vld [vmem:[#allocation7 + $0x140] sm:$0xff]
    %v122 = vld [vmem:[#allocation7 + $0x148] sm:$0xff]
    %v123 = vld [vmem:[#allocation7 + $0x150] sm:$0xff]
    %v124 = vld [vmem:[#allocation7 + $0x158] sm:$0xff]
    %v125 = vld [vmem:[#allocation7 + $0x160] sm:$0xff]
    %v126 = vld [vmem:[#allocation7 + $0x168] sm:$0xff]
    %v127 = vld [vmem:[#allocation7 + $0x170] sm:$0xff]
    %v128 = vld [vmem:[#allocation7 + $0x178] sm:$0xff]
    %v129 = vld [vmem:[#allocation7 + $0x180] sm:$0xff]
    %v130 = vld [vmem:[#allocation7 + $0x188] sm:$0xff]
    %v131 = vld [vmem:[#allocation7 + $0x190] sm:$0xff]
    %v132 = vld [vmem:[#allocation7 + $0x198] sm:$0xff]
    %v133 = vld [vmem:[#allocation7 + $0x1a0] sm:$0xff]
    %v134 = vld [vmem:[#allocation7 + $0x1a8] sm:$0xff]
    %v135 = vld [vmem:[#allocation7 + $0x1b0] sm:$0xff]
    %v136 = vld [vmem:[#allocation7 + $0x1b8] sm:$0xff]
    %v137 = vld [vmem:[#allocation7 + $0x1c0] sm:$0xff]
    %v138 = vld [vmem:[#allocation7 + $0x1c8] sm:$0xff]
    %v139 = vld [vmem:[#allocation7 + $0x1d0] sm:$0xff]
    %v140 = vld [vmem:[#allocation7 + $0x1d8] sm:$0xff]
    %v141 = vld [vmem:[#allocation7 + $0x1e0] sm:$0xff]
    %v142 = vld [vmem:[#allocation7 + $0x1e8] sm:$0xff]
    %v143 = vld [vmem:[#allocation7 + $0x1f0] sm:$0xff]
    %v144 = vld [vmem:[#allocation7 + $0x1f8] sm:$0xff]
    %v145 = vld [vmem:[#allocation2] sm:$0xff]
    %v146 = vld [vmem:[#allocation2 + $0x8] sm:$0xff]
    %v147 = vld [vmem:[#allocation8] sm:$0xff]
    %v148 = vld [vmem:[#allocation8 + $0x8] sm:$0xff]
    %v149 = vld [vmem:[#allocation8 + $0x10] sm:$0xff]
    %v150 = vld [vmem:[#allocation8 + $0x18] sm:$0xff]
    %v151 = vld [vmem:[#allocation8 + $0x20] sm:$0xff]
    %v152 = vld [vmem:[#allocation8 + $0x28] sm:$0xff]
    %v153 = vld [vmem:[#allocation8 + $0x30] sm:$0xff]
    %v154 = vld [vmem:[#allocation8 + $0x38] sm:$0xff]
    %v155 = vld [vmem:[#allocation8 + $0x40] sm:$0xff]
    %v156 = vld [vmem:[#allocation8 + $0x48] sm:$0xff]
    %v157 = vld [vmem:[#allocation8 + $0x50] sm:$0xff]
    %v158 = vld [vmem:[#allocation8 + $0x58] sm:$0xff]
    %v159 = vld [vmem:[#allocation8 + $0x60] sm:$0xff]
    %v160 = vld [vmem:[#allocation8 + $0x68] sm:$0xff]
    %v161 = vld [vmem:[#allocation8 + $0x70] sm:$0xff]
    %v162 = vld [vmem:[#allocation8 + $0x78] sm:$0xff]
    %v163 = vld [vmem:[#allocation8 + $0x80] sm:$0xff]
    %v164 = vld [vmem:[#allocation8 + $0x88] sm:$0xff]
    %v165 = vld [vmem:[#allocation8 + $0x90] sm:$0xff]
    %v166 = vld [vmem:[#allocation8 + $0x98] sm:$0xff]
    %v167 = vld [vmem:[#allocation8 + $0xa0] sm:$0xff]
    %v168 = vld [vmem:[#allocation8 + $0xa8] sm:$0xff]
    %v169 = vld [vmem:[#allocation8 + $0xb0] sm:$0xff]
    %v170 = vld [vmem:[#allocation8 + $0xb8] sm:$0xff]
    %v171 = vld [vmem:[#allocation8 + $0xc0] sm:$0xff]
    %v172 = vld [vmem:[#allocation8 + $0xc8] sm:$0xff]
    %v173 = vld [vmem:[#allocation8 + $0xd0] sm:$0xff]
    %v174 = vld [vmem:[#allocation8 + $0xd8] sm:$0xff]
    %v175 = vld [vmem:[#allocation8 + $0xe0] sm:$0xff]
    %v176 = vld [vmem:[#allocation8 + $0xe8] sm:$0xff]
    %v177 = vld [vmem:[#allocation8 + $0xf0] sm:$0xff]
    %v178 = vld [vmem:[#allocation8 + $0xf8] sm:$0xff]
    %v179 = vld [vmem:[#allocation8 + $0x100] sm:$0xff]
    %v180 = vld [vmem:[#allocation8 + $0x108] sm:$0xff]
    %v181 = vld [vmem:[#allocation8 + $0x110] sm:$0xff]
    %v182 = vld [vmem:[#allocation8 + $0x118] sm:$0xff]
    %v183 = vld [vmem:[#allocation8 + $0x120] sm:$0xff]
    %v184 = vld [vmem:[#allocation8 + $0x128] sm:$0xff]
    %v185 = vld [vmem:[#allocation8 + $0x130] sm:$0xff]
    %v186 = vld [vmem:[#allocation8 + $0x138] sm:$0xff]
    %v187 = vld [vmem:[#allocation8 + $0x140] sm:$0xff]
    %v188 = vld [vmem:[#allocation8 + $0x148] sm:$0xff]
    %v189 = vld [vmem:[#allocation8 + $0x150] sm:$0xff]
    %v190 = vld [vmem:[#allocation8 + $0x158] sm:$0xff]
    %v191 = vld [vmem:[#allocation8 + $0x160] sm:$0xff]
    %v192 = vld [vmem:[#allocation8 + $0x168] sm:$0xff]
    %v193 = vld [vmem:[#allocation8 + $0x170] sm:$0xff]
    %v194 = vld [vmem:[#allocation8 + $0x178] sm:$0xff]
    %v195 = vld [vmem:[#allocation8 + $0x180] sm:$0xff]
    %v196 = vld [vmem:[#allocation8 + $0x188] sm:$0xff]
    %v197 = vld [vmem:[#allocation8 + $0x190] sm:$0xff]
    %v198 = vld [vmem:[#allocation8 + $0x198] sm:$0xff]
    %v199 = vld [vmem:[#allocation8 + $0x1a0] sm:$0xff]
    %v200 = vld [vmem:[#allocation8 + $0x1a8] sm:$0xff]
    %v201 = vld [vmem:[#allocation8 + $0x1b0] sm:$0xff]
    %v202 = vld [vmem:[#allocation8 + $0x1b8] sm:$0xff]
    %v203 = vld [vmem:[#allocation8 + $0x1c0] sm:$0xff]
    %v204 = vld [vmem:[#allocation8 + $0x1c8] sm:$0xff]
    %v205 = vld [vmem:[#allocation8 + $0x1d0] sm:$0xff]
    %v206 = vld [vmem:[#allocation8 + $0x1d8] sm:$0xff]
    %v207 = vld [vmem:[#allocation8 + $0x1e0] sm:$0xff]
    %v208 = vld [vmem:[#allocation8 + $0x1e8] sm:$0xff]
    %v209 = vld [vmem:[#allocation8 + $0x1f0] sm:$0xff]
    %v210 = vld [vmem:[#allocation8 + $0x1f8] sm:$0xff]
    %211 = vmatprep.subr.mxu0 %v148
    %212 = vmatpush1.msra.mxu0 %v147
    %213 = vmatprep.subr.mxu0 %v152
    %214 = vmatpush1.msra.mxu0 %v151
    %215 = vmatprep.subr.mxu0 %v156
    %216 = vmatpush1.msra.mxu0 %v155
    %217 = vmatprep.subr.mxu0 %v160
    %218 = vmatpush1.msra.mxu0 %v159
    %219 = vmatprep.subr.mxu0 %v164
    %220 = vmatpush1.msra.mxu0 %v163
    %221 = vmatprep.subr.mxu0 %v168
    %222 = vmatpush1.msra.mxu0 %v167
    %223 = vmatprep.subr.mxu0 %v172
    %224 = vmatpush1.msra.mxu0 %v171
    %225 = vmatprep.subr.mxu0 %v176
    %226 = vmatpush1.msra.mxu0 %v175
    %227 = vmatprep.subr.mxu0 %v180
    %228 = vmatpush1.msra.mxu0 %v179
    %229 = vmatprep.subr.mxu0 %v184
    %230 = vmatpush1.msra.mxu0 %v183
    %231 = vmatprep.subr.mxu0 %v188
    %232 = vmatpush1.msra.mxu0 %v187
    %233 = vmatprep.subr.mxu0 %v192
    %234 = vmatpush1.msra.mxu0 %v191
    %235 = vmatprep.subr.mxu0 %v196
    %236 = vmatpush1.msra.mxu0 %v195
    %237 = vmatprep.subr.mxu0 %v200
    %238 = vmatpush1.msra.mxu0 %v199
    %239 = vmatprep.subr.mxu0 %v204
    %240 = vmatpush1.msra.mxu0 %v203
    %241 = vmatprep.subr.mxu0 %v208
    %242 = vmatpush1.msra.mxu0 %v207
    %243 = vmatprep.subr.mxu0 0.0
    %244 = vmatpush1.msra.mxu0 0.0
    %245 = vmatprep.subr.mxu0 0.0
    %246 = vmatpush1.msra.mxu0 0.0
    %247 = vmatprep.subr.mxu0 0.0
    %248 = vmatpush1.msra.mxu0 0.0
    %249 = vmatprep.subr.mxu0 0.0
    %250 = vmatpush1.msra.mxu0 0.0
    %251 = vmatprep.subr.mxu0 0.0
    %252 = vmatpush1.msra.mxu0 0.0
    %253 = vmatprep.subr.mxu0 0.0
    %254 = vmatpush1.msra.mxu0 0.0
    %255 = vmatprep.subr.mxu0 0.0
    %256 = vmatpush1.msra.mxu0 0.0
    %257 = vmatprep.subr.mxu0 0.0
    %258 = vmatpush1.msra.mxu0 0.0
    %259 = vmatprep.subr.mxu0 0.0
    %260 = vmatpush1.msra.mxu0 0.0
    %261 = vmatprep.subr.mxu0 0.0
    %262 = vmatpush1.msra.mxu0 0.0
    %263 = vmatprep.subr.mxu0 0.0
    %264 = vmatpush1.msra.mxu0 0.0
    %265 = vmatprep.subr.mxu0 0.0
    %266 = vmatpush1.msra.mxu0 0.0
    %267 = vmatprep.subr.mxu0 0.0
    %268 = vmatpush1.msra.mxu0 0.0
    %269 = vmatprep.subr.mxu0 0.0
    %270 = vmatpush1.msra.mxu0 0.0
    %271 = vmatprep.subr.mxu0 0.0
    %272 = vmatpush1.msra.mxu0 0.0
    %273 = vmatprep.subr.mxu0 0.0
    %274 = vmatpush1.msra.mxu0 0.0
    %275 = vmatprep.mubr.f32.mxu0 0.0
    %276 = vmatmul.mubr.f32.gmra.mrb[0].mxu0 %v145
    %v277 = vpop.f32.mrb[0].mxu0
    %v278 = vadd.f32 0.0, %v277
    %v279 = vpop.f32.mrb[0].mxu0
    %v280 = vadd.f32 0.0, %v279
    %281 = vmatprep.mubr.f32.mxu0 0.0
    %282 = vmatmul.mubr.f32.gmra.mrb[0].mxu0 %v146
    %v283 = vpop.f32.mrb[0].mxu0
    %v284 = vadd.f32 0.0, %v283
    %v285 = vpop.f32.mrb[0].mxu0
    %v286 = vadd.f32 0.0, %v285
    %287 = vdwg.mxu0
    %288 = vmatprep.subr.mxu0 %v150
    %289 = vmatpush1.msra.mxu0 %v149
    %290 = vmatprep.subr.mxu0 %v154
    %291 = vmatpush1.msra.mxu0 %v153
    %292 = vmatprep.subr.mxu0 %v158
    %293 = vmatpush1.msra.mxu0 %v157
    %294 = vmatprep.subr.mxu0 %v162
    %295 = vmatpush1.msra.mxu0 %v161
    %296 = vmatprep.subr.mxu0 %v166
    %297 = vmatpush1.msra.mxu0 %v165
    %298 = vmatprep.subr.mxu0 %v170
    %299 = vmatpush1.msra.mxu0 %v169
    %300 = vmatprep.subr.mxu0 %v174
    %301 = vmatpush1.msra.mxu0 %v173
    %302 = vmatprep.subr.mxu0 %v178
    %303 = vmatpush1.msra.mxu0 %v177
    %304 = vmatprep.subr.mxu0 %v182
    %305 = vmatpush1.msra.mxu0 %v181
    %306 = vmatprep.subr.mxu0 %v186
    %307 = vmatpush1.msra.mxu0 %v185
    %308 = vmatprep.subr.mxu0 %v190
    %309 = vmatpush1.msra.mxu0 %v189
    %310 = vmatprep.subr.mxu0 %v194
    %311 = vmatpush1.msra.mxu0 %v193
    %312 = vmatprep.subr.mxu0 %v198
    %313 = vmatpush1.msra.mxu0 %v197
    %314 = vmatprep.subr.mxu0 %v202
    %315 = vmatpush1.msra.mxu0 %v201
    %316 = vmatprep.subr.mxu0 %v206
    %317 = vmatpush1.msra.mxu0 %v205
    %318 = vmatprep.subr.mxu0 %v210
    %319 = vmatpush1.msra.mxu0 %v209
    %320 = vmatprep.subr.mxu0 0.0
    %321 = vmatpush1.msra.mxu0 0.0
    %322 = vmatprep.subr.mxu0 0.0
    %323 = vmatpush1.msra.mxu0 0.0
    %324 = vmatprep.subr.mxu0 0.0
    %325 = vmatpush1.msra.mxu0 0.0
    %326 = vmatprep.subr.mxu0 0.0
    %327 = vmatpush1.msra.mxu0 0.0
    %328 = vmatprep.subr.mxu0 0.0
    %329 = vmatpush1.msra.mxu0 0.0
    %330 = vmatprep.subr.mxu0 0.0
    %331 = vmatpush1.msra.mxu0 0.0
    %332 = vmatprep.subr.mxu0 0.0
    %333 = vmatpush1.msra.mxu0 0.0
    %334 = vmatprep.subr.mxu0 0.0
    %335 = vmatpush1.msra.mxu0 0.0
    %336 = vmatprep.subr.mxu0 0.0
    %337 = vmatpush1.msra.mxu0 0.0
    %338 = vmatprep.subr.mxu0 0.0
    %339 = vmatpush1.msra.mxu0 0.0
    %340 = vmatprep.subr.mxu0 0.0
    %341 = vmatpush1.msra.mxu0 0.0
    %342 = vmatprep.subr.mxu0 0.0
    %343 = vmatpush1.msra.mxu0 0.0
    %344 = vmatprep.subr.mxu0 0.0
    %345 = vmatpush1.msra.mxu0 0.0
    %346 = vmatprep.subr.mxu0 0.0
    %347 = vmatpush1.msra.mxu0 0.0
    %348 = vmatprep.subr.mxu0 0.0
    %349 = vmatpush1.msra.mxu0 0.0
    %350 = vmatprep.subr.mxu0 0.0
    %351 = vmatpush1.msra.mxu0 0.0
    %352 = vmatprep.mubr.f32.mxu0 0.0
    %353 = vmatmul.mubr.f32.gmra.mrb[0].mxu0 %v145
    %v354 = vpop.f32.mrb[0].mxu0
    %v355 = vadd.f32 0.0, %v354
    %v356 = vpop.f32.mrb[0].mxu0
    %v357 = vadd.f32 0.0, %v356
    %358 = vmatprep.mubr.f32.mxu0 0.0
    %359 = vmatmul.mubr.f32.gmra.mrb[0].mxu0 %v146
    %v360 = vpop.f32.mrb[0].mxu0
    %v361 = vadd.f32 0.0, %v360
    %v362 = vpop.f32.mrb[0].mxu0
    %v363 = vadd.f32 0.0, %v362
    %364 = vdwg.mxu0
    %365 = vmatprep.subr.mxu0 %v82
    %366 = vmatpush1.msra.mxu0 %v81
    %367 = vmatprep.subr.mxu0 %v86
    %368 = vmatpush1.msra.mxu0 %v85
    %369 = vmatprep.subr.mxu0 %v90
    %370 = vmatpush1.msra.mxu0 %v89
    %371 = vmatprep.subr.mxu0 %v94
    %372 = vmatpush1.msra.mxu0 %v93
    %373 = vmatprep.subr.mxu0 %v98
    %374 = vmatpush1.msra.mxu0 %v97
    %375 = vmatprep.subr.mxu0 %v102
    %376 = vmatpush1.msra.mxu0 %v101
    %377 = vmatprep.subr.mxu0 %v106
    %378 = vmatpush1.msra.mxu0 %v105
    %379 = vmatprep.subr.mxu0 %v110
    %380 = vmatpush1.msra.mxu0 %v109
    %381 = vmatprep.subr.mxu0 %v114
    %382 = vmatpush1.msra.mxu0 %v113
    %383 = vmatprep.subr.mxu0 %v118
    %384 = vmatpush1.msra.mxu0 %v117
    %385 = vmatprep.subr.mxu0 %v122
    %386 = vmatpush1.msra.mxu0 %v121
    %387 = vmatprep.subr.mxu0 %v126
    %388 = vmatpush1.msra.mxu0 %v125
    %389 = vmatprep.subr.mxu0 %v130
    %390 = vmatpush1.msra.mxu0 %v129
    %391 = vmatprep.subr.mxu0 %v134
    %392 = vmatpush1.msra.mxu0 %v133
    %393 = vmatprep.subr.mxu0 %v138
    %394 = vmatpush1.msra.mxu0 %v137
    %395 = vmatprep.subr.mxu0 %v142
    %396 = vmatpush1.msra.mxu0 %v141
    %397 = vmatprep.subr.mxu0 0.0
    %398 = vmatpush1.msra.mxu0 0.0
    %399 = vmatprep.subr.mxu0 0.0
    %400 = vmatpush1.msra.mxu0 0.0
    %401 = vmatprep.subr.mxu0 0.0
    %402 = vmatpush1.msra.mxu0 0.0
    %403 = vmatprep.subr.mxu0 0.0
    %404 = vmatpush1.msra.mxu0 0.0
    %405 = vmatprep.subr.mxu0 0.0
    %406 = vmatpush1.msra.mxu0 0.0
    %407 = vmatprep.subr.mxu0 0.0
    %408 = vmatpush1.msra.mxu0 0.0
    %409 = vmatprep.subr.mxu0 0.0
    %410 = vmatpush1.msra.mxu0 0.0
    %411 = vmatprep.subr.mxu0 0.0
    %412 = vmatpush1.msra.mxu0 0.0
    %413 = vmatprep.subr.mxu0 0.0
    %414 = vmatpush1.msra.mxu0 0.0
    %415 = vmatprep.subr.mxu0 0.0
    %416 = vmatpush1.msra.mxu0 0.0
    %417 = vmatprep.subr.mxu0 0.0
    %418 = vmatpush1.msra.mxu0 0.0
    %419 = vmatprep.subr.mxu0 0.0
    %420 = vmatpush1.msra.mxu0 0.0
    %421 = vmatprep.subr.mxu0 0.0
    %422 = vmatpush1.msra.mxu0 0.0
    %423 = vmatprep.subr.mxu0 0.0
    %424 = vmatpush1.msra.mxu0 0.0
    %425 = vmatprep.subr.mxu0 0.0
    %426 = vmatpush1.msra.mxu0 0.0
    %427 = vmatprep.subr.mxu0 0.0
    %428 = vmatpush1.msra.mxu0 0.0
    %429 = vmatprep.mubr.f32.mxu0 0.0
    %430 = vmatmul.mubr.f32.gmra.mrb[0].mxu0 %v79
    %v431 = vpop.f32.mrb[0].mxu0
    %v432 = vadd.f32 %v278, %v431
    %v433 = vpop.f32.mrb[0].mxu0
    %v434 = vadd.f32 %v280, %v433
    %435 = vmatprep.mubr.f32.mxu0 0.0
    %436 = vmatmul.mubr.f32.gmra.mrb[0].mxu0 %v80
    %v437 = vpop.f32.mrb[0].mxu0
    %v438 = vadd.f32 %v284, %v437
    %v439 = vpop.f32.mrb[0].mxu0
    %v440 = vadd.f32 %v286, %v439
    %441 = vdwg.mxu0
    %442 = vmatprep.subr.mxu0 %v84
    %443 = vmatpush1.msra.mxu0 %v83
    %444 = vmatprep.subr.mxu0 %v88
    %445 = vmatpush1.msra.mxu0 %v87
    %446 = vmatprep.subr.mxu0 %v92
    %447 = vmatpush1.msra.mxu0 %v91
    %448 = vmatprep.subr.mxu0 %v96
    %449 = vmatpush1.msra.mxu0 %v95
    %450 = vmatprep.subr.mxu0 %v100
    %451 = vmatpush1.msra.mxu0 %v99
    %452 = vmatprep.subr.mxu0 %v104
    %453 = vmatpush1.msra.mxu0 %v103
    %454 = vmatprep.subr.mxu0 %v108
    %455 = vmatpush1.msra.mxu0 %v107
    %456 = vmatprep.subr.mxu0 %v112
    %457 = vmatpush1.msra.mxu0 %v111
    %458 = vmatprep.subr.mxu0 %v116
    %459 = vmatpush1.msra.mxu0 %v115
    %460 = vmatprep.subr.mxu0 %v120
    %461 = vmatpush1.msra.mxu0 %v119
    %462 = vmatprep.subr.mxu0 %v124
    %463 = vmatpush1.msra.mxu0 %v123
    %464 = vmatprep.subr.mxu0 %v128
    %465 = vmatpush1.msra.mxu0 %v127
    %466 = vmatprep.subr.mxu0 %v132
    %467 = vmatpush1.msra.mxu0 %v131
    %468 = vmatprep.subr.mxu0 %v136
    %469 = vmatpush1.msra.mxu0 %v135
    %470 = vmatprep.subr.mxu0 %v140
    %471 = vmatpush1.msra.mxu0 %v139
    %472 = vmatprep.subr.mxu0 %v144
    %473 = vmatpush1.msra.mxu0 %v143
    %474 = vmatprep.subr.mxu0 0.0
    %475 = vmatpush1.msra.mxu0 0.0
    %476 = vmatprep.subr.mxu0 0.0
    %477 = vmatpush1.msra.mxu0 0.0
    %478 = vmatprep.subr.mxu0 0.0
    %479 = vmatpush1.msra.mxu0 0.0
    %480 = vmatprep.subr.mxu0 0.0
    %481 = vmatpush1.msra.mxu0 0.0
    %482 = vmatprep.subr.mxu0 0.0
    %483 = vmatpush1.msra.mxu0 0.0
    %484 = vmatprep.subr.mxu0 0.0
    %485 = vmatpush1.msra.mxu0 0.0
    %486 = vmatprep.subr.mxu0 0.0
    %487 = vmatpush1.msra.mxu0 0.0
    %488 = vmatprep.subr.mxu0 0.0
    %489 = vmatpush1.msra.mxu0 0.0
    %490 = vmatprep.subr.mxu0 0.0
    %491 = vmatpush1.msra.mxu0 0.0
    %492 = vmatprep.subr.mxu0 0.0
    %493 = vmatpush1.msra.mxu0 0.0
    %494 = vmatprep.subr.mxu0 0.0
    %495 = vmatpush1.msra.mxu0 0.0
    %496 = vmatprep.subr.mxu0 0.0
    %497 = vmatpush1.msra.mxu0 0.0
    %498 = vmatprep.subr.mxu0 0.0
    %499 = vmatpush1.msra.mxu0 0.0
    %500 = vmatprep.subr.mxu0 0.0
    %501 = vmatpush1.msra.mxu0 0.0
    %502 = vmatprep.subr.mxu0 0.0
    %503 = vmatpush1.msra.mxu0 0.0
    %504 = vmatprep.subr.mxu0 0.0
    %505 = vmatpush1.msra.mxu0 0.0
    %506 = vmatprep.mubr.f32.mxu0 0.0
    %507 = vmatmul.mubr.f32.gmra.mrb[0].mxu0 %v79
    %v508 = vpop.f32.mrb[0].mxu0
    %v509 = vadd.f32 %v355, %v508
    %v510 = vpop.f32.mrb[0].mxu0
    %v511 = vadd.f32 %v357, %v510
    %512 = vmatprep.mubr.f32.mxu0 0.0
    %513 = vmatmul.mubr.f32.gmra.mrb[0].mxu0 %v80
    %v514 = vpop.f32.mrb[0].mxu0
    %v515 = vadd.f32 %v361, %v514
    %v516 = vpop.f32.mrb[0].mxu0
    %v517 = vadd.f32 %v363, %v516
    %518 = vdwg.mxu0
    %v519 = vxor.u32 %v432, 2147483648
    %v520 = vxor.u32 %v438, 2147483648
    %v521 = vmul.f32 %v519, 1.442695
    %v522 = vpow.pop %v521
    %v523 = vmul.f32 %v520, 1.442695
    %v524 = vpow.pop %v523
    %v525 = vadd.f32 %v522, 1.0
    %v526 = vadd.f32 %v524, 1.0
    %v527 = vrcp.pop %v525
    %v528 = vmul.f32 1.0, %v527
    %v529 = vrcp.pop %v526
    %v530 = vmul.f32 1.0, %v529
    %v531 = vxor.u32 %v434, 2147483648
    %v532 = vxor.u32 %v440, 2147483648
    %v533 = vmul.f32 %v531, 1.442695
    %v534 = vpow.pop %v533
    %v535 = vmul.f32 %v532, 1.442695
    %v536 = vpow.pop %v535
    %v537 = vadd.f32 %v534, 1.0
    %v538 = vadd.f32 %v536, 1.0
    %v539 = vrcp.pop %v537
    %v540 = vmul.f32 1.0, %v539
    %v541 = vrcp.pop %v538
    %v542 = vmul.f32 1.0, %v541
    %v543 = vtanh.pop %v509
    %v544 = vtanh.pop %v515
    %v545 = vxor.u32 %v511, 2147483648
    %v546 = vxor.u32 %v517, 2147483648
    %v547 = vmul.f32 %v545, 1.442695
    %v548 = vpow.pop %v547
    %v549 = vmul.f32 %v546, 1.442695
    %v550 = vpow.pop %v549
    %v551 = vadd.f32 %v548, 1.0
    %v552 = vadd.f32 %v550, 1.0
    %v553 = vrcp.pop %v551
    %v554 = vmul.f32 1.0, %v553
    %v555 = vrcp.pop %v552
    %v556 = vmul.f32 1.0, %v555
    %v557 = vld [vmem:[#allocation5] sm:$0xff]
    %v558 = vld [vmem:[#allocation5 + $0x8] sm:$0xff]
    %v559 = vmul.f32 %v540, %v557
    %v560 = vmul.f32 %v542, %v558
    %v561 = vmul.f32 %v528, %v543
    %v562 = vmul.f32 %v530, %v544
    %v563 = vadd.f32 %v559, %v561
    %v564 = vadd.f32 %v560, %v562
    %v565 = vtanh.pop %v563
    %v566 = vtanh.pop %v564
    %v567 = vmul.f32 %v554, %v565
    %v568 = vmul.f32 %v556, %v566
    %569 = vst [vmem:[#allocation11] sm:$0xff] %v563
    %570 = vst [vmem:[#allocation11 + $0x8] sm:$0xff] %v564
    %571 = vst [vmem:[#allocation10] sm:$0xff] %v567
    %572 = vst [vmem:[#allocation10 + $0x8] sm:$0xff] %v568
    // Predicated region
    $region38: #{rnn_cell_forward.1} parent=1 // pred_check
      _
    $region39: #{rnn_cell_forward.1} parent=1 // pred_check_branch
      %574 = sbr.rel (0) target = $region41
    $region40: #{rnn_cell_forward.1} parent=1 // pred_region
      %s576 = ssub.s32 256, 256
      %577 = vsyncadd [#allocation4], %s576
      %s578 = sshll.u32 [#allocation10], 4
      %s579 = int_to_ptr.vmem [resolvable:$true] %s578
      %584 = dma.vmem_to_hbm [thread:$0]  %s579, 256, %s5, [#allocation4], 128, 128, 8
    $region41: #{rnn_cell_forward.1} parent=1 // pred_fallthru
      _
    // Predicated region
    $region42: #{rnn_cell_forward.1} parent=1 // pred_check
      _
    $region43: #{rnn_cell_forward.1} parent=1 // pred_check_branch
      %586 = sbr.rel (0) target = $region45
    $region44: #{rnn_cell_forward.1} parent=1 // pred_region
      %s588 = ssub.s32 256, 256
      %589 = vsyncadd [#allocation12], %s588
      %s590 = sshll.u32 [#allocation11], 4
      %s591 = int_to_ptr.vmem [resolvable:$true] %s590
      %596 = dma.vmem_to_hbm [thread:$0]  %s591, 256, %s6, [#allocation12], 128, 128, 8
    $region45: #{rnn_cell_forward.1} parent=1 // pred_fallthru
      _
    // Predicated region
    $region46: #{rnn_cell_forward.1} parent=1 // pred_check
      _
    $region47: #{rnn_cell_forward.1} parent=1 // pred_check_branch
      %598 = sbr.rel (0) target = $region49
    $region48: #{rnn_cell_forward.1} parent=1 // pred_region
      %599 = dma.done [#allocation4], 256
    $region49: #{rnn_cell_forward.1} parent=1 // pred_fallthru
      _
    // Predicated region
    $region50: #{rnn_cell_forward.1} parent=1 // pred_check
      _
    $region51: #{rnn_cell_forward.1} parent=1 // pred_check_branch
      %601 = sbr.rel (0) target = $region53
    $region52: #{rnn_cell_forward.1} parent=1 // pred_region
      %602 = dma.done [#allocation12], 256
    $region53: #{rnn_cell_forward.1} parent=1 // pred_fallthru
      _
    %603 = vsyncpa [#allocation3], 1
    %604 = vsyncpa [#allocation6], 1
    %605 = vsyncpa [#allocation9], 1
    %606 = vsyncpa [#allocation4], 1
    %607 = vsyncpa [#allocation12], 1

</llo_original>
